<compile_context>
chip_gen: v5e
topology: v5e:2x2
jax: 0.10.0
libtpu: 0.0.40
codegen_flags: <defaults>
</compile_context>

<pallas_src>
import jax
import jax.numpy as jnp
from jax.experimental import pallas as pl
from jax.experimental.pallas import tpu as pltpu

IN_FEATURES = 10
HIDDEN = 50
CHUNK = 2048     # in-kernel compute chunk (rows); bounds live intermediates
MAX_TB = 8192    # max rows per grid step (multiple of CHUNK)


def _round_up(n, m):
    return ((n + m - 1) // m) * m


def _pick_tile(batch):
    """Pick the per-grid-step batch tile.

    Aim for >=2 grid steps when the batch is large (so the parallel axis can
    shard across v7x's two TensorCores) while capping the tile at MAX_TB rows.
    Large tiles are forced to be a multiple of CHUNK so the in-kernel chunk
    loop divides evenly; small tiles are just rounded to the 8-row sublane
    granularity.
    """
    half = pl.cdiv(batch, 2)
    if half <= CHUNK:
        return max(8, _round_up(half, 8))
    return min(MAX_TB, _round_up(half, CHUNK))


def _make_kernel(tb):
    chunk = min(CHUNK, tb)
    n_chunks = tb // chunk  # exact by construction of _pick_tile

    def kernel(x_ref, w1_ref, b1_ref, w2_ref, b2_ref, o_ref):
        # x_ref:  (TB, 10)   VMEM, pipelined per grid step (lane-padded to 128)
        # w1_ref: (10, 50)   VMEM, resident across grid steps
        # b1_ref: (1, 50)    VMEM, resident
        # w2_ref: (50, 1)    VMEM, resident (natural fc2 column)
        # b2_ref: (1,)       SMEM scalar
        # o_ref:  (TB, 1)    VMEM output block (same row orientation as x)
        def compute_rows(r0, rows):
            xs = x_ref[pl.ds(r0, rows), :]
            h = jnp.dot(xs, w1_ref[...], preferred_element_type=jnp.float32)
            h = jnp.maximum(h + b1_ref[...], 0.0)          # bias + ReLU on VPU
            # fc2 (50 -> 1) on the (otherwise idle) MXU: result is already a
            # (rows, 1) column in the output orientation -- no relayout needed.
            y = jnp.dot(h, w2_ref[...], preferred_element_type=jnp.float32)
            o_ref[pl.ds(r0, rows), :] = (y + b2_ref[0]).astype(o_ref.dtype)

        if n_chunks == 1:
            compute_rows(0, tb)
        else:
            def body(c, carry):
                r0 = pl.multiple_of(c * chunk, chunk)
                compute_rows(r0, chunk)
                return carry
            jax.lax.fori_loop(0, n_chunks, body, 0, unroll=True)

    return kernel


def simplenet_forward(x, w1, b1, w2, b2):
    """x: (B, 10) f32; w1: (10, 50); b1: (50,); w2: (50, 1); b2: (1,)."""
    batch = x.shape[0]
    tb = _pick_tile(batch)
    num_tiles = pl.cdiv(batch, tb)

    b1_row = b1.reshape(1, HIDDEN)
    w2_col = w2.reshape(HIDDEN, 1)
    b2_s = b2.reshape(1)

    flops = 2 * batch * IN_FEATURES * HIDDEN + 2 * batch * HIDDEN + 2 * batch * HIDDEN
    bytes_accessed = 4 * (x.size + w1.size + b1.size + w2.size + b2.size + batch)

    out = pl.pallas_call(
        _make_kernel(tb),
        out_shape=jax.ShapeDtypeStruct((batch, 1), jnp.float32),
        grid=(num_tiles,),
        in_specs=[
            pl.BlockSpec((tb, IN_FEATURES), lambda i: (i, 0)),      # x: per-tile DMA
            pl.BlockSpec((IN_FEATURES, HIDDEN), lambda i: (0, 0)),  # w1: resident
            pl.BlockSpec((1, HIDDEN), lambda i: (0, 0)),            # b1: resident
            pl.BlockSpec((HIDDEN, 1), lambda i: (0, 0)),            # w2: resident
            pl.BlockSpec(memory_space=pltpu.SMEM),                  # b2 scalar in SMEM
        ],
        out_specs=pl.BlockSpec((tb, 1), lambda i: (i, 0)),
        compiler_params=pltpu.CompilerParams(
            dimension_semantics=("parallel",),
            vmem_limit_bytes=32 * 1024 * 1024,  # v5e default is 16 MiB; raise it
        ),
        cost_estimate=pl.CostEstimate(
            flops=flops, transcendentals=0, bytes_accessed=bytes_accessed),
    )(x, w1, b1_row, w2_col, b2_s)

    return out


def init_params(key):
    """Deterministic init mimicking PyTorch nn.Linear default (uniform +-1/sqrt(fan_in))."""
    k1, k2, k3, k4 = jax.random.split(key, 4)
    bound1 = 1.0 / jnp.sqrt(10.0)
    bound2 = 1.0 / jnp.sqrt(50.0)
    # Stored already transposed to (in, out) for the kernel.
    w1 = jax.random.uniform(k1, (IN_FEATURES, HIDDEN), jnp.float32, -bound1, bound1)
    b1 = jax.random.uniform(k2, (HIDDEN,), jnp.float32, -bound1, bound1)
    w2 = jax.random.uniform(k3, (HIDDEN, 1), jnp.float32, -bound2, bound2)
    b2 = jax.random.uniform(k4, (1,), jnp.float32, -bound2, bound2)
    return w1, b1, w2, b2


def _ref(x, w1, b1, w2, b2):
    return jnp.maximum(x @ w1 + b1, 0.0) @ w2 + b2


if __name__ == "__main__":
    key = jax.random.PRNGKey(0)
    k_params, k_x = jax.random.split(key)
    w1, b1, w2, b2 = init_params(k_params)

    # Small batch (matches the PyTorch module's (B, 10) input): single tile.
    B = 8
    x = jax.random.normal(k_x, (B, IN_FEATURES), jnp.float32)
    out = jax.block_until_ready(simplenet_forward(x, w1, b1, w2, b2))
    assert out.shape == (B, 1)
    assert jnp.allclose(out, _ref(x, w1, b1, w2, b2), atol=1e-5, rtol=1e-5)

    # Two tiles with a ragged last block (no wrapper-side padding of x).
    B2 = 1153
    x2 = jax.random.normal(jax.random.PRNGKey(1), (B2, IN_FEATURES), jnp.float32)
    out2 = jax.block_until_ready(simplenet_forward(x2, w1, b1, w2, b2))
    assert out2.shape == (B2, 1)
    assert jnp.allclose(out2, _ref(x2, w1, b1, w2, b2), atol=1e-5, rtol=1e-5)

    # Large batch: exercises MAX_TB tiles, the in-kernel chunk loop, and a
    # ragged final grid block.
    B3 = 20000
    x3 = jax.random.normal(jax.random.PRNGKey(2), (B3, IN_FEATURES), jnp.float32)
    out3 = jax.block_until_ready(simplenet_forward(x3, w1, b1, w2, b2))
    assert out3.shape == (B3, 1)
    assert jnp.allclose(out3, _ref(x3, w1, b1, w2, b2), atol=1e-5, rtol=1e-5)

    print("KERNEL_OK")
</pallas_src>

<mosaic_0001>
module attributes {stable_mosaic.version = 11 : i64} {
  func.func @kernel(%arg0: i32, %arg1: memref<8x10xf32, #tpu.memory_space<vmem>>, %arg2: memref<10x50xf32, #tpu.memory_space<vmem>>, %arg3: memref<1x50xf32, #tpu.memory_space<vmem>>, %arg4: memref<50x1xf32, #tpu.memory_space<vmem>>, %arg5: memref<1xf32, #tpu.memory_space<smem>>, %arg6: memref<8x1xf32, #tpu.memory_space<vmem>>) attributes {dimension_semantics = [#tpu.dimension_semantics<parallel>], iteration_bounds = array<i64: 1>, scalar_prefetch = 0 : i64, scratch_operands = 0 : i64, tpu.core_type = #tpu.core_type<tc>, window_params = [{transform_indices = @transform_0, window_bounds = array<i64: 8, 10>}, {pipeline_mode = #tpu.pipeline_mode<synchronous>, transform_indices = @transform_1, window_bounds = array<i64: 10, 50>}, {pipeline_mode = #tpu.pipeline_mode<synchronous>, transform_indices = @transform_2, window_bounds = array<i64: 1, 50>}, {pipeline_mode = #tpu.pipeline_mode<synchronous>, transform_indices = @transform_3, window_bounds = array<i64: 50, 1>}, {transform_indices = @transform_4, window_bounds = array<i64: 1>}, {transform_indices = @transform_5, window_bounds = array<i64: 8, 1>}]} {
    %c0 = arith.constant 0 : index
    %c0_0 = arith.constant 0 : index
    %0 = vector.load %arg1[%c0, %c0_0] : memref<8x10xf32, #tpu.memory_space<vmem>>, vector<8x10xf32>
    %c0_1 = arith.constant 0 : index
    %c0_2 = arith.constant 0 : index
    %1 = vector.load %arg2[%c0_1, %c0_2] : memref<10x50xf32, #tpu.memory_space<vmem>>, vector<10x50xf32>
    %cst = arith.constant dense<0.000000e+00> : vector<8x50xf32>
    %2 = tpu.matmul %0, %1, %cst {dimension_numbers = #tpu.dot_dimension_numbers<[1], [0], [0], [1], [0, 0, 1, 1], [], []>} : vector<8x10xf32>, vector<10x50xf32>, vector<8x50xf32> -> vector<8x50xf32>
    %c0_3 = arith.constant 0 : index
    %c0_4 = arith.constant 0 : index
    %3 = vector.load %arg3[%c0_3, %c0_4] : memref<1x50xf32, #tpu.memory_space<vmem>>, vector<1x50xf32>
    %4 = vector.broadcast %3 : vector<1x50xf32> to vector<8x50xf32>
    %5 = arith.addf %2, %4 : vector<8x50xf32>
    %cst_5 = arith.constant 0.000000e+00 : f32
    %6 = vector.broadcast %cst_5 : f32 to vector<8x50xf32>
    %7 = arith.maximumf %5, %6 : vector<8x50xf32>
    %c0_6 = arith.constant 0 : index
    %c0_7 = arith.constant 0 : index
    %8 = vector.load %arg4[%c0_6, %c0_7] : memref<50x1xf32, #tpu.memory_space<vmem>>, vector<50x1xf32>
    %cst_8 = arith.constant dense<0.000000e+00> : vector<8x1xf32>
    %9 = tpu.matmul %7, %8, %cst_8 {dimension_numbers = #tpu.dot_dimension_numbers<[1], [0], [0], [1], [0, 0, 1, 1], [], []>} : vector<8x50xf32>, vector<50x1xf32>, vector<8x1xf32> -> vector<8x1xf32>
    %c0_9 = arith.constant 0 : index
    %10 = memref.load %arg5[%c0_9] : memref<1xf32, #tpu.memory_space<smem>>
    %11 = vector.broadcast %10 : f32 to vector<8x1xf32>
    %12 = arith.addf %9, %11 : vector<8x1xf32>
    %c0_10 = arith.constant 0 : index
    %c0_11 = arith.constant 0 : index
    %13 = vector.load %arg6[%c0_10, %c0_11] : memref<8x1xf32, #tpu.memory_space<vmem>>, vector<8x1xf32>
    tpu.vector_store %arg6[%c0_10, %c0_11], %12 {strides = array<i32>} : memref<8x1xf32, #tpu.memory_space<vmem>>, vector<8x1xf32>,
    return
  }
  func.func @transform_0(%arg0: i32) -> (i32, i32) {
    %c0_i32 = arith.constant 0 : i32
    %c0_i32_0 = arith.constant 0 : i32
    return %arg0, %c0_i32 : i32, i32
  }
  func.func @transform_1(%arg0: i32) -> (i32, i32) {
    %c0_i32 = arith.constant 0 : i32
    %c0_i32_0 = arith.constant 0 : i32
    %c0_i32_1 = arith.constant 0 : i32
    return %c0_i32, %c0_i32_0 : i32, i32
  }
  func.func @transform_2(%arg0: i32) -> (i32, i32) {
    %c0_i32 = arith.constant 0 : i32
    %c0_i32_0 = arith.constant 0 : i32
    %c0_i32_1 = arith.constant 0 : i32
    return %c0_i32, %c0_i32_0 : i32, i32
  }
  func.func @transform_3(%arg0: i32) -> (i32, i32) {
    %c0_i32 = arith.constant 0 : i32
    %c0_i32_0 = arith.constant 0 : i32
    %c0_i32_1 = arith.constant 0 : i32
    return %c0_i32, %c0_i32_0 : i32, i32
  }
  func.func @transform_4(%arg0: i32) -> i32 {
    %c0_i32 = arith.constant 0 : i32
    %c0_i32_0 = arith.constant 0 : i32
    return %c0_i32 : i32
  }
  func.func @transform_5(%arg0: i32) -> (i32, i32) {
    %c0_i32 = arith.constant 0 : i32
    %c0_i32_0 = arith.constant 0 : i32
    return %arg0, %c0_i32 : i32, i32
  }
}

</mosaic_0001>

<llo_original>
// kernel: tpu_custom_call.1
$region0: #{tpu_custom_call.1}
  #allocation0 [shape = 'u32[]', space=smem, size = 0x4, offset = 0x4, fixed_abs, tag = 'smem constant byte address 0x4 - core index']
  #allocation1 [shape = 'u32[72,128]{1,0:T(1,128)}', space=vmem, size = 0x9000, scoped, tag = 'internal scratch']
  #allocation2 [shape = 'f32[1]{0:T(128)S(6)}', space=smem, size = 0x200, scoped, tag = 'scoped memory for tpu_custom_call.1']
  %s0 = inlined_call_operand.vmem [shape: f32[8,10], index: 0, kind: input, shape index: {}]
  %s1 = inlined_call_operand.vmem [shape: f32[10,50], index: 1, kind: input, shape index: {}]
  %s2 = inlined_call_operand.vmem [shape: f32[1,50], index: 2, kind: input, shape index: {}]
  %s3 = inlined_call_operand.vmem [shape: f32[50,1], index: 3, kind: input, shape index: {}]
  %s4 = inlined_call_operand.<no memory space> [shape: f32[1], index: 4, kind: input, shape index: {}]
  %s5 = inlined_call_operand.vmem [shape: f32[8,1], index: 5, kind: output, shape index: {}]
  %s6 = sld [smem:[#allocation0]]
  $region30: #{tpu_custom_call.1} parent=0
    _
  %s8 = ssub.s32 1, %s6
  %s9 = scalar_select 0, %s8, %s6
  %10 = sst [smem:[#allocation2]] %s4
  // Predicated region
  $region2: #{tpu_custom_call.1} parent=0 // pred_check
    _
  $region3: #{tpu_custom_call.1} parent=0 // pred_check_branch
    %12 = sbr.rel (0) target = $region5
  $region4: #{tpu_custom_call.1} parent=0 // pred_region
    _
  $region5: #{tpu_custom_call.1} parent=0 // pred_fallthru
    _
  // Predicated region
  $region6: #{tpu_custom_call.1} parent=0 // pred_check
    _
  $region7: #{tpu_custom_call.1} parent=0 // pred_check_branch
    %14 = sbr.rel (0) target = $region9
  $region8: #{tpu_custom_call.1} parent=0 // pred_region
    _
  $region9: #{tpu_custom_call.1} parent=0 // pred_fallthru
    _
  // Predicated region
  $region10: #{tpu_custom_call.1} parent=0 // pred_check
    _
  $region11: #{tpu_custom_call.1} parent=0 // pred_check_branch
    %16 = sbr.rel (0) target = $region13
  $region12: #{tpu_custom_call.1} parent=0 // pred_region
    _
  $region13: #{tpu_custom_call.1} parent=0 // pred_fallthru
    _
  // Predicated region
  $region14: #{tpu_custom_call.1} parent=0 // pred_check
    _
  $region15: #{tpu_custom_call.1} parent=0 // pred_check_branch
    %18 = sbr.rel (0) target = $region17
  $region16: #{tpu_custom_call.1} parent=0 // pred_region
    _
  $region17: #{tpu_custom_call.1} parent=0 // pred_fallthru
    _
  // Predicated region
  $region18: #{tpu_custom_call.1} parent=0 // pred_check
    _
  $region19: #{tpu_custom_call.1} parent=0 // pred_check_branch
    %20 = sbr.rel (0) target = $region21
  $region20: #{tpu_custom_call.1} parent=0 // pred_region
    _
  $region21: #{tpu_custom_call.1} parent=0 // pred_fallthru
    _
  %v21 = vld [vmem:[%s0] sm:$0xff]
  %v22 = vld [vmem:[%s1] sm:$0xff]
  %v23 = vld [vmem:[%s1 + $0x8] sm:$0x3]
  %v24 = vld [vmem:[%s2] sm:$0x1]
  %v26 = vperm.slane %v24, 0
  %vm28 = vcmask 80896
  %v30 = vsel %vm28, %v21, 0
  %vm32 = vcmask 1041408
  %v34 = vsel %vm32, %v23, 0
  %36 = vmatpush.msra.mxu0 0.0
  %37 = vmatpush.msra.mxu0 0.0
  %38 = vmatpush.msra.mxu0 0.0
  %39 = vmatpush.msra.mxu0 0.0
  %40 = vmatpush.msra.mxu0 0.0
  %41 = vmatpush.msra.mxu0 0.0
  %42 = vmatpush.msra.mxu0 0.0
  %43 = vmatpush.msra.mxu0 0.0
  %44 = vmatpush.msra.mxu0 0.0
  %45 = vmatpush.msra.mxu0 0.0
  %46 = vmatpush.msra.mxu0 0.0
  %47 = vmatpush.msra.mxu0 0.0
  %48 = vmatpush.msra.mxu0 0.0
  %49 = vmatpush.msra.mxu0 0.0
  %50 = vmatpush.msra.mxu0 %v34
  %51 = vmatpush.msra.mxu0 %v22
  %52 = vmatmul.f32.gmra.mxu0 %v30
  %v53 = vpop.f32.mrf.mxu0
  %v54 = vadd.f32 %v26, %v53
  %55 = vdwg.mxu0
  %v56 = vmax.f32 %v54, 0.0
  %v57 = vld [vmem:[%s3] sm:$0xff]
  %v58 = vld [vmem:[%s3 + $0x8] sm:$0xff]
  %v59 = vld [vmem:[%s3 + $0x10] sm:$0xff]
  %v60 = vld [vmem:[%s3 + $0x18] sm:$0xff]
  %v61 = vld [vmem:[%s3 + $0x20] sm:$0xff]
  %v62 = vld [vmem:[%s3 + $0x28] sm:$0xff]
  %v63 = vld [vmem:[%s3 + $0x30] sm:$0x3]
  %s64 = sld [smem:[#allocation2]]
  %v65 = vstv %s64
  %vm66 = vcmask 408576
  %v68 = vsel %vm66, %v56, 0
  %v71 = vsel %vm32, %v63, 0
  %73 = vmatpush.msra.mxu0 0.0
  %74 = vmatpush.msra.mxu0 0.0
  %75 = vmatpush.msra.mxu0 0.0
  %76 = vmatpush.msra.mxu0 0.0
  %77 = vmatpush.msra.mxu0 0.0
  %78 = vmatpush.msra.mxu0 0.0
  %79 = vmatpush.msra.mxu0 0.0
  %80 = vmatpush.msra.mxu0 0.0
  %81 = vmatpush.msra.mxu0 0.0
  %82 = vmatpush.msra.mxu0 %v71
  %83 = vmatpush.msra.mxu0 %v62
  %84 = vmatpush.msra.mxu0 %v61
  %85 = vmatpush.msra.mxu0 %v60
  %86 = vmatpush.msra.mxu0 %v59
  %87 = vmatpush.msra.mxu0 %v58
  %88 = vmatpush.msra.mxu0 %v57
  %89 = vmatmul.f32.gmra.mxu0 %v68
  %v90 = vpop.f32.mrf.mxu0
  %v91 = vadd.f32 %v65, %v90
  %92 = vdwg.mxu0
  %vm93 = vcmask 7168
  %94 = vst.msk [vmem:[%s5] sm:$0xff] %vm93, %v91
  // Predicated region
  $region22: #{tpu_custom_call.1} parent=0 // pred_check
    _
  $region23: #{tpu_custom_call.1} parent=0 // pred_check_branch
    %96 = sbr.rel (0) target = $region25
  $region24: #{tpu_custom_call.1} parent=0 // pred_region
    _
  $region25: #{tpu_custom_call.1} parent=0 // pred_fallthru
    _
  // Predicated region
  $region26: #{tpu_custom_call.1} parent=0 // pred_check
    _
  $region27: #{tpu_custom_call.1} parent=0 // pred_check_branch
    %98 = sbr.rel (0) target = $region29
  $region28: #{tpu_custom_call.1} parent=0 // pred_region
    _
  $region29: #{tpu_custom_call.1} parent=0 // pred_fallthru
    _

</llo_original>
